<compile_context>
chip_gen: v7x
topology: tpu7x:2x2x1
jax: 0.10.0
libtpu: 0.0.40
codegen_flags: <defaults>
</compile_context>

<pallas_src>
import functools

import jax
import jax.numpy as jnp
from jax.experimental import pallas as pl
from jax.experimental.pallas import tpu as pltpu


def _rerep_kernel(x_ref, out_ref, *, n_support, alpha_1, alpha_2, tau):
    """x_ref/out_ref: (TB, N, D) blocks; support rows are [:n_support]."""
    x = x_ref[...]                                  # (TB, N, D), native dtype
    S = n_support
    s = x[:, :S, :]                                 # (TB, S, D)
    q = x[:, S:, :]                                 # (TB, Q, D)
    Q = q.shape[1]

    f32 = jnp.float32
    s32 = s.astype(f32)
    q32 = q.astype(f32)

    # ---------------- re_represent_queries ----------------
    # squared euclidean distance: ||x||^2 + ||y||^2 - 2 x.y  (== cdist(...)**2)
    # norms in f32; the gram matrix uses native-dtype operands with f32 accum
    # (no explicit .T -> einsum contracts D on both operands directly).
    qsq = jnp.sum(q32 * q32, axis=-1, keepdims=True)            # (TB, Q, 1)
    gram_qq = jnp.einsum('bid,bjd->bij', q, q,
                         preferred_element_type=f32)            # (TB, Q, Q)
    d2_qq = qsq + jnp.swapaxes(qsq, -1, -2) - 2.0 * gram_qq
    logits_q = -tau * d2_qq

    m_q = jnp.max(logits_q, axis=-1, keepdims=True)
    e_q = jnp.exp(logits_q - m_q)
    # diagonal contributes exactly 0 to the softmax -> zero it after the exp
    row = jax.lax.broadcasted_iota(jnp.int32, (Q, Q), 0)
    col = jax.lax.broadcasted_iota(jnp.int32, (Q, Q), 1)
    e_q = jnp.where((row == col)[None, :, :], 0.0, e_q)
    inv_den_q = pl.reciprocal(jnp.sum(e_q, axis=-1, keepdims=True),
                              approx=False)
    attn_q = e_q * inv_den_q                                    # (TB, Q, Q)

    # re_rep[b, i, d] = sum_j attn[b, i, j] * q[b, j, d]
    re_rep_q = jnp.einsum('bij,bjd->bid', attn_q.astype(x.dtype), q,
                          preferred_element_type=f32)
    q_new = (1.0 - alpha_1) * q32 + alpha_1 * re_rep_q          # (TB, Q, D) f32

    # ---------------- re_represent_supports ----------------
    q_new_cast = q_new.astype(x.dtype)
    ssq = jnp.sum(s32 * s32, axis=-1, keepdims=True)            # (TB, S, 1)
    qnsq = jnp.sum(q_new * q_new, axis=-1, keepdims=True)       # (TB, Q, 1)
    gram_sq = jnp.einsum('bid,bjd->bij', s, q_new_cast,
                         preferred_element_type=f32)            # (TB, S, Q)
    d2_sq = ssq + jnp.swapaxes(qnsq, -1, -2) - 2.0 * gram_sq
    logits_s = -tau * d2_sq

    m_s = jnp.max(logits_s, axis=-1, keepdims=True)
    e_s = jnp.exp(logits_s - m_s)
    inv_den_s = pl.reciprocal(jnp.sum(e_s, axis=-1, keepdims=True),
                              approx=False)
    attn_s = e_s * inv_den_s                                    # (TB, S, Q)

    re_rep_s = jnp.einsum('bij,bjd->bid', attn_s.astype(x.dtype), q_new_cast,
                          preferred_element_type=f32)
    s_new = (1.0 - alpha_2) * s32 + alpha_2 * re_rep_s          # (TB, S, D) f32

    # write both halves of the fused output (support rows first, then queries)
    out_ref[:, :S, :] = s_new.astype(out_ref.dtype)
    out_ref[:, S:, :] = q_new.astype(out_ref.dtype)


def _pick_block_b(B, max_block=8):
    """Largest divisor of B <= max_block; prefer >= 2 grid steps (v7x 2 TCs)."""
    candidates = [d for d in range(1, min(B, max_block) + 1) if B % d == 0]
    preferred = [d for d in candidates if B // d >= 2]
    return max(preferred) if preferred else max(candidates)


def re_representation_forward(features, support_labels,
                              alpha_1=0.5, alpha_2=0.9, tau=0.1,
                              big_num=1.0e9, block_b=None):
    """features: [B, N, D]; support_labels: [B, n_support] (only the size of
    dim 1 is used, matching the PyTorch module).  `big_num` is kept for API
    compatibility; the diagonal is masked exactly inside the kernel."""
    del big_num
    B, N, D = features.shape
    n_support = int(support_labels.shape[1])
    assert 0 < n_support < N

    if block_b is None:
        block_b = _pick_block_b(B)
    assert B % block_b == 0, "block_b must divide the batch size"
    grid = (B // block_b,)

    kernel = functools.partial(
        _rerep_kernel, n_support=n_support,
        alpha_1=float(alpha_1), alpha_2=float(alpha_2), tau=float(tau))

    return pl.pallas_call(
        kernel,
        out_shape=jax.ShapeDtypeStruct((B, N, D), features.dtype),
        grid_spec=pl.GridSpec(
            grid=grid,
            in_specs=[pl.BlockSpec((block_b, N, D), lambda b: (b, 0, 0))],
            out_specs=pl.BlockSpec((block_b, N, D), lambda b: (b, 0, 0)),
        ),
        compiler_params=pltpu.CompilerParams(
            dimension_semantics=("parallel",)),
    )(features)


# ---------------------------- pure-JAX reference ----------------------------
def _reference_forward(features, support_labels,
                       alpha_1=0.5, alpha_2=0.9, tau=0.1, big_num=1.0e9):
    n_support = support_labels.shape[1]
    s = features[:, :n_support]
    q = features[:, n_support:]

    def sqdist(a, b):
        a2 = jnp.sum(a * a, axis=-1, keepdims=True)
        b2 = jnp.sum(b * b, axis=-1, keepdims=True)
        return a2 + jnp.swapaxes(b2, -1, -2) - 2.0 * jnp.einsum('bid,bjd->bij', a, b)

    # queries
    d = sqdist(q, q)
    logits = -tau * d
    Qn = q.shape[1]
    eye = jnp.eye(Qn, dtype=bool)
    logits = jnp.where(eye[None], -big_num, logits)
    attn = jax.nn.softmax(logits, axis=2)
    re_rep = jnp.einsum('bij,bjd->bid', attn, q)
    q_new = (1 - alpha_1) * q + alpha_1 * re_rep

    # supports
    d2 = sqdist(s, q_new)
    attn2 = jax.nn.softmax(-tau * d2, axis=2)
    re_rep2 = jnp.einsum('bij,bjd->bid', attn2, q_new)
    s_new = (1 - alpha_2) * s + alpha_2 * re_rep2
    return jnp.concatenate((s_new, q_new), axis=1)


if __name__ == "__main__":
    key = jax.random.PRNGKey(0)
    B, n_support, n_query, D = 2, 4, 8, 128   # D multiple of 128 -> lane-dense
    N = n_support + n_query

    k1, k2 = jax.random.split(key)
    features = jax.random.normal(k1, (B, N, D), dtype=jnp.float32)
    # only the shape of dim 1 of support_labels matters
    support_labels = jax.random.randint(k2, (B, n_support), 0, 5)

    out = re_representation_forward(features, support_labels)
    out = jax.block_until_ready(out)

    ref = _reference_forward(features, support_labels)
    assert out.shape == (B, N, D)
    assert jnp.allclose(out, ref, atol=1e-4, rtol=1e-4), "mismatch vs reference"

    print("KERNEL_OK")
</pallas_src>

<mosaic_0001>
module attributes {stable_mosaic.version = 11 : i64} {
  func.func @_rerep_kernel(%arg0: i32, %arg1: memref<1x12x128xf32, #tpu.memory_space<vmem>>, %arg2: memref<1x12x128xf32, #tpu.memory_space<vmem>>) attributes {dimension_semantics = [#tpu.dimension_semantics<parallel>], iteration_bounds = array<i64: 2>, scalar_prefetch = 0 : i64, scratch_operands = 0 : i64, tpu.core_type = #tpu.core_type<tc>, window_params = [{transform_indices = @transform_0, window_bounds = array<i64: 1, 12, 128>}, {transform_indices = @transform_1, window_bounds = array<i64: 1, 12, 128>}]} {
    %c0 = arith.constant 0 : index
    %c0_0 = arith.constant 0 : index
    %c0_1 = arith.constant 0 : index
    %0 = vector.load %arg1[%c0, %c0_0, %c0_1] : memref<1x12x128xf32, #tpu.memory_space<vmem>>, vector<1x12x128xf32>
    %1 = vector.extract_strided_slice %0 {offsets = [0, 0, 0], sizes = [1, 4, 128], strides = [1, 1, 1]} : vector<1x12x128xf32> to vector<1x4x128xf32>
    %2 = vector.extract_strided_slice %0 {offsets = [0, 4, 0], sizes = [1, 8, 128], strides = [1, 1, 1]} : vector<1x12x128xf32> to vector<1x8x128xf32>
    %3 = arith.mulf %2, %2 : vector<1x8x128xf32>
    %cst = arith.constant dense<0.000000e+00> : vector<1x8xf32>
    %4 = vector.multi_reduction <add>, %3, %cst [2] : vector<1x8x128xf32> to vector<1x8xf32>
    %5 = vector.shape_cast %4 : vector<1x8xf32> to vector<1x8x1xf32>
    "tpu.trace_start"() <{level = 10 : i32, message = "bid,bjd->bij"}> : () -> ()
    %cst_2 = arith.constant dense<0.000000e+00> : vector<1x8x8xf32>
    %6 = tpu.matmul %2, %2, %cst_2 {dimension_numbers = #tpu.dot_dimension_numbers<[2], [2], [1], [1], [0, 0, 0, 1, 1, 1], [0], [0]>} : vector<1x8x128xf32>, vector<1x8x128xf32>, vector<1x8x8xf32> -> vector<1x8x8xf32>
    "tpu.trace_stop"() : () -> ()
    %7 = tpu.transpose %5, [0, 2, 1] : vector<1x8x1xf32> -> vector<1x1x8xf32>
    %8 = vector.broadcast %5 : vector<1x8x1xf32> to vector<1x8x8xf32>
    %9 = vector.broadcast %7 : vector<1x1x8xf32> to vector<1x8x8xf32>
    %10 = arith.addf %8, %9 : vector<1x8x8xf32>
    %cst_3 = arith.constant 2.000000e+00 : f32
    %11 = vector.broadcast %cst_3 : f32 to vector<1x8x8xf32>
    %12 = arith.mulf %11, %6 : vector<1x8x8xf32>
    %13 = arith.subf %10, %12 : vector<1x8x8xf32>
    %cst_4 = arith.constant -1.000000e-01 : f32
    %14 = vector.broadcast %cst_4 : f32 to vector<1x8x8xf32>
    %15 = arith.mulf %14, %13 : vector<1x8x8xf32>
    %cst_5 = arith.constant dense<0xFF800000> : vector<1x8xf32>
    %16 = vector.multi_reduction <maximumf>, %15, %cst_5 [2] : vector<1x8x8xf32> to vector<1x8xf32>
    %17 = vector.shape_cast %16 : vector<1x8xf32> to vector<1x8x1xf32>
    %18 = vector.broadcast %17 : vector<1x8x1xf32> to vector<1x8x8xf32>
    %19 = arith.subf %15, %18 : vector<1x8x8xf32>
    %20 = math.exp %19 : vector<1x8x8xf32>
    %21 = tpu.iota {dimensions = array<i32: 0>} : vector<8x8xi32>
    %22 = tpu.iota {dimensions = array<i32: 1>} : vector<8x8xi32>
    %23 = arith.cmpi eq, %21, %22 : vector<8x8xi32>
    %24 = vector.shape_cast %23 : vector<8x8xi1> to vector<1x8x8xi1>
    %cst_6 = arith.constant 0.000000e+00 : f32
    %25 = vector.broadcast %cst_6 : f32 to vector<1x8x8xf32>
    %26 = arith.select %24, %25, %20 : vector<1x8x8xi1>, vector<1x8x8xf32>
    %cst_7 = arith.constant dense<0.000000e+00> : vector<1x8xf32>
    %27 = vector.multi_reduction <add>, %26, %cst_7 [2] : vector<1x8x8xf32> to vector<1x8xf32>
    %28 = vector.shape_cast %27 : vector<1x8xf32> to vector<1x8x1xf32>
    %29 = tpu.reciprocal %28 : vector<1x8x1xf32> -> vector<1x8x1xf32>
    %30 = vector.broadcast %29 : vector<1x8x1xf32> to vector<1x8x8xf32>
    %31 = arith.mulf %26, %30 : vector<1x8x8xf32>
    "tpu.trace_start"() <{level = 10 : i32, message = "bij,bjd->bid"}> : () -> ()
    %cst_8 = arith.constant dense<0.000000e+00> : vector<1x8x128xf32>
    %32 = tpu.matmul %31, %2, %cst_8 {dimension_numbers = #tpu.dot_dimension_numbers<[2], [1], [1], [2], [0, 0, 0, 1, 1, 2], [0], [0]>} : vector<1x8x8xf32>, vector<1x8x128xf32>, vector<1x8x128xf32> -> vector<1x8x128xf32>
    "tpu.trace_stop"() : () -> ()
    %cst_9 = arith.constant 5.000000e-01 : f32
    %33 = vector.broadcast %cst_9 : f32 to vector<1x8x128xf32>
    %34 = arith.mulf %33, %2 : vector<1x8x128xf32>
    %cst_10 = arith.constant 5.000000e-01 : f32
    %35 = vector.broadcast %cst_10 : f32 to vector<1x8x128xf32>
    %36 = arith.mulf %35, %32 : vector<1x8x128xf32>
    %37 = arith.addf %34, %36 : vector<1x8x128xf32>
    %38 = arith.mulf %1, %1 : vector<1x4x128xf32>
    %cst_11 = arith.constant dense<0.000000e+00> : vector<1x4xf32>
    %39 = vector.multi_reduction <add>, %38, %cst_11 [2] : vector<1x4x128xf32> to vector<1x4xf32>
    %40 = vector.shape_cast %39 : vector<1x4xf32> to vector<1x4x1xf32>
    %41 = arith.mulf %37, %37 : vector<1x8x128xf32>
    %cst_12 = arith.constant dense<0.000000e+00> : vector<1x8xf32>
    %42 = vector.multi_reduction <add>, %41, %cst_12 [2] : vector<1x8x128xf32> to vector<1x8xf32>
    %43 = vector.shape_cast %42 : vector<1x8xf32> to vector<1x8x1xf32>
    "tpu.trace_start"() <{level = 10 : i32, message = "bid,bjd->bij"}> : () -> ()
    %cst_13 = arith.constant dense<0.000000e+00> : vector<1x4x8xf32>
    %44 = tpu.matmul %1, %37, %cst_13 {dimension_numbers = #tpu.dot_dimension_numbers<[2], [2], [1], [1], [0, 0, 0, 1, 1, 1], [0], [0]>} : vector<1x4x128xf32>, vector<1x8x128xf32>, vector<1x4x8xf32> -> vector<1x4x8xf32>
    "tpu.trace_stop"() : () -> ()
    %45 = tpu.transpose %43, [0, 2, 1] : vector<1x8x1xf32> -> vector<1x1x8xf32>
    %46 = vector.broadcast %40 : vector<1x4x1xf32> to vector<1x4x8xf32>
    %47 = vector.broadcast %45 : vector<1x1x8xf32> to vector<1x4x8xf32>
    %48 = arith.addf %46, %47 : vector<1x4x8xf32>
    %cst_14 = arith.constant 2.000000e+00 : f32
    %49 = vector.broadcast %cst_14 : f32 to vector<1x4x8xf32>
    %50 = arith.mulf %49, %44 : vector<1x4x8xf32>
    %51 = arith.subf %48, %50 : vector<1x4x8xf32>
    %cst_15 = arith.constant -1.000000e-01 : f32
    %52 = vector.broadcast %cst_15 : f32 to vector<1x4x8xf32>
    %53 = arith.mulf %52, %51 : vector<1x4x8xf32>
    %cst_16 = arith.constant dense<0xFF800000> : vector<1x4xf32>
    %54 = vector.multi_reduction <maximumf>, %53, %cst_16 [2] : vector<1x4x8xf32> to vector<1x4xf32>
    %55 = vector.shape_cast %54 : vector<1x4xf32> to vector<1x4x1xf32>
    %56 = vector.broadcast %55 : vector<1x4x1xf32> to vector<1x4x8xf32>
    %57 = arith.subf %53, %56 : vector<1x4x8xf32>
    %58 = math.exp %57 : vector<1x4x8xf32>
    %cst_17 = arith.constant dense<0.000000e+00> : vector<1x4xf32>
    %59 = vector.multi_reduction <add>, %58, %cst_17 [2] : vector<1x4x8xf32> to vector<1x4xf32>
    %60 = vector.shape_cast %59 : vector<1x4xf32> to vector<1x4x1xf32>
    %61 = tpu.reciprocal %60 : vector<1x4x1xf32> -> vector<1x4x1xf32>
    %62 = vector.broadcast %61 : vector<1x4x1xf32> to vector<1x4x8xf32>
    %63 = arith.mulf %58, %62 : vector<1x4x8xf32>
    "tpu.trace_start"() <{level = 10 : i32, message = "bij,bjd->bid"}> : () -> ()
    %cst_18 = arith.constant dense<0.000000e+00> : vector<1x4x128xf32>
    %64 = tpu.matmul %63, %37, %cst_18 {dimension_numbers = #tpu.dot_dimension_numbers<[2], [1], [1], [2], [0, 0, 0, 1, 1, 2], [0], [0]>} : vector<1x4x8xf32>, vector<1x8x128xf32>, vector<1x4x128xf32> -> vector<1x4x128xf32>
    "tpu.trace_stop"() : () -> ()
    %cst_19 = arith.constant 1.000000e-01 : f32
    %65 = vector.broadcast %cst_19 : f32 to vector<1x4x128xf32>
    %66 = arith.mulf %65, %1 : vector<1x4x128xf32>
    %cst_20 = arith.constant 0.899999976 : f32
    %67 = vector.broadcast %cst_20 : f32 to vector<1x4x128xf32>
    %68 = arith.mulf %67, %64 : vector<1x4x128xf32>
    %69 = arith.addf %66, %68 : vector<1x4x128xf32>
    %c0_21 = arith.constant 0 : index
    %c0_22 = arith.constant 0 : index
    %c0_23 = arith.constant 0 : index
    %70 = vector.load %arg2[%c0_21, %c0_22, %c0_23] : memref<1x12x128xf32, #tpu.memory_space<vmem>>, vector<1x4x128xf32>
    tpu.vector_store %arg2[%c0_21, %c0_22, %c0_23], %69 {strides = array<i32>} : memref<1x12x128xf32, #tpu.memory_space<vmem>>, vector<1x4x128xf32>,
    %c0_24 = arith.constant 0 : index
    %c4 = arith.constant 4 : index
    %c0_25 = arith.constant 0 : index
    %71 = vector.load %arg2[%c0_24, %c4, %c0_25] : memref<1x12x128xf32, #tpu.memory_space<vmem>>, vector<1x8x128xf32>
    tpu.vector_store %arg2[%c0_24, %c4, %c0_25], %37 {strides = array<i32>} : memref<1x12x128xf32, #tpu.memory_space<vmem>>, vector<1x8x128xf32>,
    return
  }
  func.func @transform_0(%arg0: i32) -> (i32, i32, i32) {
    %c0_i32 = arith.constant 0 : i32
    %c0_i32_0 = arith.constant 0 : i32
    %c0_i32_1 = arith.constant 0 : i32
    return %arg0, %c0_i32, %c0_i32_0 : i32, i32, i32
  }
  func.func @transform_1(%arg0: i32) -> (i32, i32, i32) {
    %c0_i32 = arith.constant 0 : i32
    %c0_i32_0 = arith.constant 0 : i32
    %c0_i32_1 = arith.constant 0 : i32
    return %arg0, %c0_i32, %c0_i32_0 : i32, i32, i32
  }
}

</mosaic_0001>

<llo_original>
// kernel: tpu_custom_call.1
$region0: #{tpu_custom_call.1}
  #allocation0 [shape = 'u32[]', space=smem, size = 0x4, offset = 0x4, fixed_abs, tag = 'smem constant byte address 0x4 - core index']
  #allocation1 [shape = 'u32[144,128]{1,0:T(1,128)}', space=vmem, size = 0x12000, scoped, tag = 'internal scratch']
  %s0 = inlined_call_operand.vmem [shape: f32[2,12,128], index: 0, kind: input, shape index: {}]
  %s1 = inlined_call_operand.vmem [shape: f32[2,12,128], index: 1, kind: output, shape index: {}]
  %s2 = sld [smem:[#allocation0]]
  $region37: #{tpu_custom_call.1} parent=0
    _
  %s4 = ssub.s32 1, %s2
  %s5 = scalar_select 0, %s4, %s2
  loop: start=0, step=1, limit=4
  $region2: #{tpu_custom_call.1} parent=0 // loop_pre_header
    _
  $region3: #{tpu_custom_call.1} parent=0 // loop_header
    %s7 = sphi 0, %s11
    %p8 = scmp.ge.s32.totalorder %s7, 4
    %s17 = sphi 0, %s19
    %s20 = sphi 0, %s17
    %s21 = sphi 0, %s20
    %s37 = sphi 0, %s21
    %s43 = sphi 0, %s45
    %s46 = sphi 0, %s43
    %s47 = sphi 0, %s46
    %s63 = sphi 0, %s47
  $region4: #{tpu_custom_call.1} parent=0 // loop_header_branch
    %10 = sbr.rel (%p8) target = $region8
  $region5: #{tpu_custom_call.1} parent=0 // loop_body
    %s12 = ssub.s32 %s7, 1
    %s13 = ssub.s32 %s7, 2
    %s14 = sadd.s32 %s7, 1
    %s15 = ssub.s32 %s7, %s14
    %p16 = scmp.eq.s32.totalorder %s15, 0
    %s18 = sadd.s32 %s17, 1
    %s19 = scalar_select %p16, %s17, %s18
    %p22 = pneg %p16
    %p23 = scmp.eq.s32.totalorder %s7, 1
    %p24 = por %p22, %p23
    %p25 = scmp.ne.s32.totalorder %s17, %s20
    %p26 = scmp.eq.s32.totalorder %s7, 0
    %p27 = por %p25, %p26
    %p28 = scmp.ne.s32.totalorder %s17, %s20
    %p29 = scmp.eq.s32.totalorder %s12, 1
    %p30 = por %p28, %p29
    %p31 = scmp.ne.s32.totalorder %s20, %s21
    %p32 = scmp.eq.s32.totalorder %s12, 0
    %p33 = por %p31, %p32
    %p34 = scmp.ne.s32.totalorder %s20, %s21
    %p35 = scmp.eq.s32.totalorder %s13, 1
    %p36 = por %p34, %p35
    %p38 = scmp.ne.s32.totalorder %s21, %s37
    %p39 = scmp.eq.s32.totalorder %s13, 0
    %p40 = por %p38, %p39
    %s41 = ssub.s32 %s7, %s14
    %p42 = scmp.eq.s32.totalorder %s41, 0
    %s44 = sadd.s32 %s43, 1
    %s45 = scalar_select %p42, %s43, %s44
    %p48 = pneg %p42
    %p49 = scmp.eq.s32.totalorder %s7, 1
    %p50 = por %p48, %p49
    %p51 = scmp.ne.s32.totalorder %s43, %s46
    %p52 = scmp.eq.s32.totalorder %s7, 0
    %p53 = por %p51, %p52
    %p54 = scmp.ne.s32.totalorder %s43, %s46
    %p55 = scmp.eq.s32.totalorder %s12, 1
    %p56 = por %p54, %p55
    %p57 = scmp.ne.s32.totalorder %s46, %s47
    %p58 = scmp.eq.s32.totalorder %s12, 0
    %p59 = por %p57, %p58
    %p60 = scmp.ne.s32.totalorder %s46, %s47
    %p61 = scmp.eq.s32.totalorder %s13, 1
    %p62 = por %p60, %p61
    %p64 = scmp.ne.s32.totalorder %s47, %s63
    %p65 = scmp.eq.s32.totalorder %s13, 0
    %p66 = por %p64, %p65
    %p67 = scmp.le.s32.totalorder 1, %s7
    %p68 = scmp.lt.s32.totalorder %s7, 3
    %p69 = pnand %p67, %p68
    %p70 = pneg %p69
    // Predicated region
    $region9: #{tpu_custom_call.1} parent=5 // pred_check
      _
    $region10: #{tpu_custom_call.1} parent=5 // pred_check_branch
      %72 = sbr.rel (%p69) target = $region12
    $region11: #{tpu_custom_call.1} parent=5 // pred_region
      %s73 = ssub.s32 %s7, 1
    $region12: #{tpu_custom_call.1} parent=5 // pred_fallthru
      _
    %p74 = scmp.lt.s32.totalorder %s7, 2
    // Predicated region
    $region13: #{tpu_custom_call.1} parent=5 // pred_check
      %p75 = pneg %p74
    $region14: #{tpu_custom_call.1} parent=5 // pred_check_branch
      %77 = sbr.rel (%p75) target = $region16
    $region15: #{tpu_custom_call.1} parent=5 // pred_region
      // Predicated region
      $region17: #{tpu_custom_call.1} parent=15 // pred_check
        %p78 = pneg %p27
      $region18: #{tpu_custom_call.1} parent=15 // pred_check_branch
        %80 = sbr.rel (%p78) target = $region20
      $region19: #{tpu_custom_call.1} parent=15 // pred_region
        %p81 = scmp.lt.s32.totalorder %s7, 1
        %s82 = scalar_select %p81, %s7, 1
        %s83 = smul.addr %s82, 2
        %s84 = smul.addr %s83, 8
        %s85 = scalar_lea.vmem %s0, %s84
      $region20: #{tpu_custom_call.1} parent=15 // pred_fallthru
        _
    $region16: #{tpu_custom_call.1} parent=5 // pred_fallthru
      _
    %p86 = scmp.le.s32.totalorder 1, %s7
    %p87 = scmp.lt.s32.totalorder %s7, 3
    %p88 = pnand %p86, %p87
    %p89 = pneg %p88
    // Predicated region
    $region21: #{tpu_custom_call.1} parent=5 // pred_check
      _
    $region22: #{tpu_custom_call.1} parent=5 // pred_check_branch
      %91 = sbr.rel (%p88) target = $region24
    $region23: #{tpu_custom_call.1} parent=5 // pred_region
      %s92 = ssub.s32 %s7, 1
      %p93 = scmp.lt.s32.totalorder %s12, 1
      %s94 = scalar_select %p93, %s12, 1
      %s95 = smul.addr %s94, 2
      %s96 = smul.addr %s95, 8
      %s97 = scalar_lea.vmem %s0, %s96
      %p98 = pneg %p33
      %p99 = pneg %p30
      %p100 = pneg %p59
      %p101 = pneg %p56
      %p102 = scmp.lt.s32.totalorder %s12, 1
      %s103 = scalar_select %p102, %s12, 1
      %s104 = smul.addr %s103, 2
      %s105 = smul.addr %s104, 8
      %s106 = scalar_lea.vmem %s1, %s105
      %p107 = scmp.lt.s32.totalorder %s12, 1
      %s108 = scalar_select %p107, %s12, 1
      %s109 = smul.addr %s108, 2
      %s110 = smul.addr %s109, 8
      %s111 = scalar_lea.vmem %s0, %s110
      %p112 = scmp.lt.s32.totalorder %s12, 1
      %s113 = scalar_select %p112, %s12, 1
      %s114 = smul.addr %s113, 2
      %s115 = smul.addr %s114, 8
      %s116 = scalar_lea.vmem %s1, %s115
      %v117 = vld [vmem:[%s111] sm:$0xff]
      %v118 = vld [vmem:[%s111 + $0x8] sm:$0xf]
      %v119 = vmul.f32 %v117, %v117
      %v120 = vmul.f32 %v118, %v118
      %vm121 = vcmask 1047556
      %v122 = vsel %vm121, %v119, 0.0
      %123 = vadd.xlane.f32.xlu0 %v122
      %v124 = vpop.xlane.xlu0 %123
      %vm125 = vcmask 1043456
      %v126 = vsel %vm125, %v120, 0.0
      %127 = vadd.xlane.f32.xlu0 %v126
      %v128 = vpop.xlane.xlu0 %127
      %v131 = vrot.slane %v117, 4
      %v132 = vrot.slane %v118, 4
      %v133 = vsel %vm125, %v131, %v132
      %135 = vmatprep.subr.mxu0 0.0
      %136 = vmatpush1.xpose.msra.mxu0 %v133
      %137 = vmatprep.subr.mxu0 0.0
      %138 = vmatpush1.xpose.msra.mxu0 0.0
      %139 = vmatprep.subr.mxu0 0.0
      %140 = vmatpush1.xpose.msra.mxu0 0.0
      %141 = vmatprep.subr.mxu0 0.0
      %142 = vmatpush1.xpose.msra.mxu0 0.0
      %143 = vmatprep.subr.mxu0 0.0
      %144 = vmatpush1.xpose.msra.mxu0 0.0
      %145 = vmatprep.subr.mxu0 0.0
      %146 = vmatpush1.xpose.msra.mxu0 0.0
      %147 = vmatprep.subr.mxu0 0.0
      %148 = vmatpush1.xpose.msra.mxu0 0.0
      %149 = vmatprep.subr.mxu0 0.0
      %150 = vmatpush1.xpose.msra.mxu0 0.0
      %151 = vmatprep.subr.mxu0 0.0
      %152 = vmatpush1.xpose.msra.mxu0 0.0
      %153 = vmatprep.subr.mxu0 0.0
      %154 = vmatpush1.xpose.msra.mxu0 0.0
      %155 = vmatprep.subr.mxu0 0.0
      %156 = vmatpush1.xpose.msra.mxu0 0.0
      %157 = vmatprep.subr.mxu0 0.0
      %158 = vmatpush1.xpose.msra.mxu0 0.0
      %159 = vmatprep.subr.mxu0 0.0
      %160 = vmatpush1.xpose.msra.mxu0 0.0
      %161 = vmatprep.subr.mxu0 0.0
      %162 = vmatpush1.xpose.msra.mxu0 0.0
      %163 = vmatprep.subr.mxu0 0.0
      %164 = vmatpush1.xpose.msra.mxu0 0.0
      %165 = vmatprep.subr.mxu0 0.0
      %166 = vmatpush1.xpose.msra.mxu0 0.0
      %167 = vmatprep.subr.mxu0 0.0
      %168 = vmatpush1.xpose.msra.mxu0 0.0
      %169 = vmatprep.subr.mxu0 0.0
      %170 = vmatpush1.xpose.msra.mxu0 0.0
      %171 = vmatprep.subr.mxu0 0.0
      %172 = vmatpush1.xpose.msra.mxu0 0.0
      %173 = vmatprep.subr.mxu0 0.0
      %174 = vmatpush1.xpose.msra.mxu0 0.0
      %175 = vmatprep.subr.mxu0 0.0
      %176 = vmatpush1.xpose.msra.mxu0 0.0
      %177 = vmatprep.subr.mxu0 0.0
      %178 = vmatpush1.xpose.msra.mxu0 0.0
      %179 = vmatprep.subr.mxu0 0.0
      %180 = vmatpush1.xpose.msra.mxu0 0.0
      %181 = vmatprep.subr.mxu0 0.0
      %182 = vmatpush1.xpose.msra.mxu0 0.0
      %183 = vmatprep.subr.mxu0 0.0
      %184 = vmatpush1.xpose.msra.mxu0 0.0
      %185 = vmatprep.subr.mxu0 0.0
      %186 = vmatpush1.xpose.msra.mxu0 0.0
      %187 = vmatprep.subr.mxu0 0.0
      %188 = vmatpush1.xpose.msra.mxu0 0.0
      %189 = vmatprep.subr.mxu0 0.0
      %190 = vmatpush1.xpose.msra.mxu0 0.0
      %191 = vmatprep.subr.mxu0 0.0
      %192 = vmatpush1.xpose.msra.mxu0 0.0
      %193 = vmatprep.subr.mxu0 0.0
      %194 = vmatpush1.xpose.msra.mxu0 0.0
      %195 = vmatprep.subr.mxu0 0.0
      %196 = vmatpush1.xpose.msra.mxu0 0.0
      %197 = vmatprep.subr.mxu0 0.0
      %198 = vmatpush1.xpose.msra.mxu0 0.0
      %199 = vmatprep.mubr.f32.mxu0 0.0
      %200 = vmatmul.mubr.f32.gmra.mrb[0].mxu0 %v133
      %v201 = vpop.f32.mrb[0].mxu0
      %v202 = vadd.f32 0.0, %v201
      %v203 = vpop.f32.mrb[0].mxu0
      %204 = vdwg.mxu0
      %v207 = vrot.slane %v124, 4
      %v208 = vrot.slane %v128, 4
      %v209 = vsel %vm125, %v207, %v208
      %211 = vxpose.xlu0.b32.start [1/16] %v209, 128
      %212 = vxpose.xlu0.b32.cont [2/16] 0.0, 128
      %213 = vxpose.xlu0.b32.cont [3/16] 0.0, 128
      %214 = vxpose.xlu0.b32.cont [4/16] 0.0, 128
      %215 = vxpose.xlu0.b32.cont [5/16] 0.0, 128
      %216 = vxpose.xlu0.b32.cont [6/16] 0.0, 128
      %217 = vxpose.xlu0.b32.cont [7/16] 0.0, 128
      %218 = vxpose.xlu0.b32.cont [8/16] 0.0, 128
      %219 = vxpose.xlu0.b32.cont [9/16] 0.0, 128
      %220 = vxpose.xlu0.b32.cont [10/16] 0.0, 128
      %221 = vxpose.xlu0.b32.cont [11/16] 0.0, 128
      %222 = vxpose.xlu0.b32.cont [12/16] 0.0, 128
      %223 = vxpose.xlu0.b32.cont [13/16] 0.0, 128
      %224 = vxpose.xlu0.b32.cont [14/16] 0.0, 128
      %225 = vxpose.xlu0.b32.cont [15/16] 0.0, 128
      %226 = vxpose.xlu0.b32.end [16/16] 0.0, 128
      %v227 = vpop.trf.xlu0
      %v228 = vpop.trf.xlu0
      %v229 = vpop.trf.xlu0
      %v230 = vpop.trf.xlu0
      %v231 = vpop.trf.xlu0
      %v232 = vpop.trf.xlu0
      %v233 = vpop.trf.xlu0
      %v234 = vpop.trf.xlu0
      %v235 = vpop.trf.xlu0
      %v236 = vpop.trf.xlu0
      %v237 = vpop.trf.xlu0
      %v238 = vpop.trf.xlu0
      %v239 = vpop.trf.xlu0
      %v240 = vpop.trf.xlu0
      %v241 = vpop.trf.xlu0
      %v242 = vpop.trf.xlu0
      %v243 = vlaneseq
      %v244 = vshrl.u32 %v243, 7
      %v245 = vsub.s32 0, %v244
      %v246 = vrot.slane %v227, %v245
      %v247 = vadd.f32 %v124, %v246
      %v248 = vadd.f32 %v128, %v246
      %v249 = vmul.f32 %v202, 2.0
      %v251 = vrot.slane %v249, 4
      %v253 = vsub.f32 %v247, %v251
      %v254 = vsub.f32 %v248, %v251
      %v255 = vmul.f32 %v253, -0.1
      %v256 = vmul.f32 %v254, -0.1
      %vm257 = vcmask 64516
      %v258 = vsel %vm257, %v255, -inf
      %259 = vmax.xlane.f32.xlu0 %v258
      %v260 = vpop.xlane.xlu0 %259
      %vm261 = vcmask 60416
      %v262 = vsel %vm261, %v256, -inf
      %263 = vmax.xlane.f32.xlu0 %v262
      %v264 = vpop.xlane.xlu0 %263
      %v265 = vsub.f32 %v255, %v260
      %v266 = vsub.f32 %v256, %v264
      %v267 = vmul.f32 %v265, 1.442695
      %v268 = vpow.pop %v267
      %v269 = vmul.f32 %v266, 1.442695
      %v270 = vpow.pop %v269
      %v271 = vlaneseq
      %v272 = vshrl.u32 %v271, 7
      %v273 = vlaneseq
      %v274 = vand.u32 %v273, 127
      %vm275 = vcmp.eq.s32.totalorder %v272, %v274
      %v278 = vrot.slane %v268, 4
      %v279 = vrot.slane %v270, 4
      %v280 = vsel %vm125, %v278, %v279
      %v282 = vsel %vm275, 0.0, %v280
      %vm283 = vcmask 64512
      %v284 = vsel %vm283, %v282, 0.0
      %285 = vadd.xlane.f32.xlu0 %v284
      %v286 = vpop.xlane.xlu0 %285
      %v287 = vrcp.pop %v286
      %v288 = vmul.f32 %v282, %v287
      %v290 = vsel %vm283, %v288, 0
      %292 = vmatprep.subr.mxu0 0.0
      %293 = vmatpush1.msra.mxu0 %v133
      %294 = vmatprep.subr.mxu0 0.0
      %295 = vmatpush1.msra.mxu0 0.0
      %296 = vmatprep.subr.mxu0 0.0
      %297 = vmatpush1.msra.mxu0 0.0
      %298 = vmatprep.subr.mxu0 0.0
      %299 = vmatpush1.msra.mxu0 0.0
      %300 = vmatprep.subr.mxu0 0.0
      %301 = vmatpush1.msra.mxu0 0.0
      %302 = vmatprep.subr.mxu0 0.0
      %303 = vmatpush1.msra.mxu0 0.0
      %304 = vmatprep.subr.mxu0 0.0
      %305 = vmatpush1.msra.mxu0 0.0
      %306 = vmatprep.subr.mxu0 0.0
      %307 = vmatpush1.msra.mxu0 0.0
      %308 = vmatprep.subr.mxu0 0.0
      %309 = vmatpush1.msra.mxu0 0.0
      %310 = vmatprep.subr.mxu0 0.0
      %311 = vmatpush1.msra.mxu0 0.0
      %312 = vmatprep.subr.mxu0 0.0
      %313 = vmatpush1.msra.mxu0 0.0
      %314 = vmatprep.subr.mxu0 0.0
      %315 = vmatpush1.msra.mxu0 0.0
      %316 = vmatprep.subr.mxu0 0.0
      %317 = vmatpush1.msra.mxu0 0.0
      %318 = vmatprep.subr.mxu0 0.0
      %319 = vmatpush1.msra.mxu0 0.0
      %320 = vmatprep.subr.mxu0 0.0
      %321 = vmatpush1.msra.mxu0 0.0
      %322 = vmatprep.subr.mxu0 0.0
      %323 = vmatpush1.msra.mxu0 0.0
      %324 = vmatprep.subr.mxu0 0.0
      %325 = vmatpush1.msra.mxu0 0.0
      %326 = vmatprep.subr.mxu0 0.0
      %327 = vmatpush1.msra.mxu0 0.0
      %328 = vmatprep.subr.mxu0 0.0
      %329 = vmatpush1.msra.mxu0 0.0
      %330 = vmatprep.subr.mxu0 0.0
      %331 = vmatpush1.msra.mxu0 0.0
      %332 = vmatprep.subr.mxu0 0.0
      %333 = vmatpush1.msra.mxu0 0.0
      %334 = vmatprep.subr.mxu0 0.0
      %335 = vmatpush1.msra.mxu0 0.0
      %336 = vmatprep.subr.mxu0 0.0
      %337 = vmatpush1.msra.mxu0 0.0
      %338 = vmatprep.subr.mxu0 0.0
      %339 = vmatpush1.msra.mxu0 0.0
      %340 = vmatprep.subr.mxu0 0.0
      %341 = vmatpush1.msra.mxu0 0.0
      %342 = vmatprep.subr.mxu0 0.0
      %343 = vmatpush1.msra.mxu0 0.0
      %344 = vmatprep.subr.mxu0 0.0
      %345 = vmatpush1.msra.mxu0 0.0
      %346 = vmatprep.subr.mxu0 0.0
      %347 = vmatpush1.msra.mxu0 0.0
      %348 = vmatprep.subr.mxu0 0.0
      %349 = vmatpush1.msra.mxu0 0.0
      %350 = vmatprep.subr.mxu0 0.0
      %351 = vmatpush1.msra.mxu0 0.0
      %352 = vmatprep.subr.mxu0 0.0
      %353 = vmatpush1.msra.mxu0 0.0
      %354 = vmatprep.subr.mxu0 0.0
      %355 = vmatpush1.msra.mxu0 0.0
      %356 = vmatprep.mubr.f32.mxu0 0.0
      %357 = vmatmul.mubr.f32.gmra.mrb[0].mxu0 %v290
      %v358 = vpop.f32.mrb[0].mxu0
      %v359 = vadd.f32 0.0, %v358
      %v360 = vpop.f32.mrb[0].mxu0
      %361 = vdwg.mxu0
      %v362 = vmul.f32 %v117, 0.5
      %v363 = vmul.f32 %v118, 0.5
      %v364 = vmul.f32 %v359, 0.5
      %v366 = vrot.slane %v364, 4
      %v368 = vadd.f32 %v362, %v366
      %v369 = vadd.f32 %v363, %v366
      %v370 = vsel %vm125, %v119, 0.0
      %371 = vadd.xlane.f32.xlu0 %v370
      %v372 = vpop.xlane.xlu0 %371
      %v373 = vmul.f32 %v368, %v368
      %v374 = vmul.f32 %v369, %v369
      %v375 = vsel %vm121, %v373, 0.0
      %376 = vadd.xlane.f32.xlu0 %v375
      %v377 = vpop.xlane.xlu0 %376
      %v378 = vsel %vm125, %v374, 0.0
      %379 = vadd.xlane.f32.xlu0 %v378
      %v380 = vpop.xlane.xlu0 %379
      %v383 = vrot.slane %v368, 4
      %v384 = vrot.slane %v369, 4
      %v385 = vsel %vm125, %v383, %v384
      %387 = vmatprep.subr.mxu0 0.0
      %388 = vmatpush1.xpose.msra.mxu0 %v385
      %389 = vmatprep.subr.mxu0 0.0
      %390 = vmatpush1.xpose.msra.mxu0 0.0
      %391 = vmatprep.subr.mxu0 0.0
      %392 = vmatpush1.xpose.msra.mxu0 0.0
      %393 = vmatprep.subr.mxu0 0.0
      %394 = vmatpush1.xpose.msra.mxu0 0.0
      %395 = vmatprep.subr.mxu0 0.0
      %396 = vmatpush1.xpose.msra.mxu0 0.0
      %397 = vmatprep.subr.mxu0 0.0
      %398 = vmatpush1.xpose.msra.mxu0 0.0
      %399 = vmatprep.subr.mxu0 0.0
      %400 = vmatpush1.xpose.msra.mxu0 0.0
      %401 = vmatprep.subr.mxu0 0.0
      %402 = vmatpush1.xpose.msra.mxu0 0.0
      %403 = vmatprep.subr.mxu0 0.0
      %404 = vmatpush1.xpose.msra.mxu0 0.0
      %405 = vmatprep.subr.mxu0 0.0
      %406 = vmatpush1.xpose.msra.mxu0 0.0
      %407 = vmatprep.subr.mxu0 0.0
      %408 = vmatpush1.xpose.msra.mxu0 0.0
      %409 = vmatprep.subr.mxu0 0.0
      %410 = vmatpush1.xpose.msra.mxu0 0.0
      %411 = vmatprep.subr.mxu0 0.0
      %412 = vmatpush1.xpose.msra.mxu0 0.0
      %413 = vmatprep.subr.mxu0 0.0
      %414 = vmatpush1.xpose.msra.mxu0 0.0
      %415 = vmatprep.subr.mxu0 0.0
      %416 = vmatpush1.xpose.msra.mxu0 0.0
      %417 = vmatprep.subr.mxu0 0.0
      %418 = vmatpush1.xpose.msra.mxu0 0.0
      %419 = vmatprep.subr.mxu0 0.0
      %420 = vmatpush1.xpose.msra.mxu0 0.0
      %421 = vmatprep.subr.mxu0 0.0
      %422 = vmatpush1.xpose.msra.mxu0 0.0
      %423 = vmatprep.subr.mxu0 0.0
      %424 = vmatpush1.xpose.msra.mxu0 0.0
      %425 = vmatprep.subr.mxu0 0.0
      %426 = vmatpush1.xpose.msra.mxu0 0.0
      %427 = vmatprep.subr.mxu0 0.0
      %428 = vmatpush1.xpose.msra.mxu0 0.0
      %429 = vmatprep.subr.mxu0 0.0
      %430 = vmatpush1.xpose.msra.mxu0 0.0
      %431 = vmatprep.subr.mxu0 0.0
      %432 = vmatpush1.xpose.msra.mxu0 0.0
      %433 = vmatprep.subr.mxu0 0.0
      %434 = vmatpush1.xpose.msra.mxu0 0.0
      %435 = vmatprep.subr.mxu0 0.0
      %436 = vmatpush1.xpose.msra.mxu0 0.0
      %437 = vmatprep.subr.mxu0 0.0
      %438 = vmatpush1.xpose.msra.mxu0 0.0
      %439 = vmatprep.subr.mxu0 0.0
      %440 = vmatpush1.xpose.msra.mxu0 0.0
      %441 = vmatprep.subr.mxu0 0.0
      %442 = vmatpush1.xpose.msra.mxu0 0.0
      %443 = vmatprep.subr.mxu0 0.0
      %444 = vmatpush1.xpose.msra.mxu0 0.0
      %445 = vmatprep.subr.mxu0 0.0
      %446 = vmatpush1.xpose.msra.mxu0 0.0
      %447 = vmatprep.subr.mxu0 0.0
      %448 = vmatpush1.xpose.msra.mxu0 0.0
      %449 = vmatprep.subr.mxu0 0.0
      %450 = vmatpush1.xpose.msra.mxu0 0.0
      %451 = vmatprep.mubr.f32.mxu0 0.0
      %452 = vmatmul.mubr.f32.gmra.mrb[0].mxu0 %v117
      %v453 = vpop.f32.mrb[0].mxu0
      %v454 = vadd.f32 0.0, %v453
      %v455 = vpop.f32.mrb[0].mxu0
      %456 = vdwg.mxu0
      %v459 = vrot.slane %v377, 4
      %v460 = vrot.slane %v380, 4
      %v461 = vsel %vm125, %v459, %v460
      %463 = vxpose.xlu0.b32.start [1/16] %v461, 128
      %464 = vxpose.xlu0.b32.cont [2/16] 0.0, 128
      %465 = vxpose.xlu0.b32.cont [3/16] 0.0, 128
      %466 = vxpose.xlu0.b32.cont [4/16] 0.0, 128
      %467 = vxpose.xlu0.b32.cont [5/16] 0.0, 128
      %468 = vxpose.xlu0.b32.cont [6/16] 0.0, 128
      %469 = vxpose.xlu0.b32.cont [7/16] 0.0, 128
      %470 = vxpose.xlu0.b32.cont [8/16] 0.0, 128
      %471 = vxpose.xlu0.b32.cont [9/16] 0.0, 128
      %472 = vxpose.xlu0.b32.cont [10/16] 0.0, 128
      %473 = vxpose.xlu0.b32.cont [11/16] 0.0, 128
      %474 = vxpose.xlu0.b32.cont [12/16] 0.0, 128
      %475 = vxpose.xlu0.b32.cont [13/16] 0.0, 128
      %476 = vxpose.xlu0.b32.cont [14/16] 0.0, 128
      %477 = vxpose.xlu0.b32.cont [15/16] 0.0, 128
      %478 = vxpose.xlu0.b32.end [16/16] 0.0, 128
      %v479 = vpop.trf.xlu0
      %v480 = vpop.trf.xlu0
      %v481 = vpop.trf.xlu0
      %v482 = vpop.trf.xlu0
      %v483 = vpop.trf.xlu0
      %v484 = vpop.trf.xlu0
      %v485 = vpop.trf.xlu0
      %v486 = vpop.trf.xlu0
      %v487 = vpop.trf.xlu0
      %v488 = vpop.trf.xlu0
      %v489 = vpop.trf.xlu0
      %v490 = vpop.trf.xlu0
      %v491 = vpop.trf.xlu0
      %v492 = vpop.trf.xlu0
      %v493 = vpop.trf.xlu0
      %v494 = vpop.trf.xlu0
      %v495 = vlaneseq
      %v496 = vshrl.u32 %v495, 7
      %v497 = vsub.s32 0, %v496
      %v498 = vrot.slane %v479, %v497
      %v499 = vadd.f32 %v372, %v498
      %v500 = vmul.f32 %v454, 2.0
      %v501 = vsub.f32 %v499, %v500
      %v502 = vmul.f32 %v501, -0.1
      %v503 = vsel %vm261, %v502, -inf
      %504 = vmax.xlane.f32.xlu0 %v503
      %v505 = vpop.xlane.xlu0 %504
      %v506 = vsub.f32 %v502, %v505
      %v507 = vmul.f32 %v506, 1.442695
      %v508 = vpow.pop %v507
      %v509 = vsel %vm261, %v508, 0.0
      %510 = vadd.xlane.f32.xlu0 %v509
      %v511 = vpop.xlane.xlu0 %510
      %v512 = vrcp.pop %v511
      %v513 = vmul.f32 %v508, %v512
      %v515 = vsel %vm283, %v513, 0
      %517 = vmatprep.subr.mxu0 0.0
      %518 = vmatpush1.msra.mxu0 %v385
      %519 = vmatprep.subr.mxu0 0.0
      %520 = vmatpush1.msra.mxu0 0.0
      %521 = vmatprep.subr.mxu0 0.0
      %522 = vmatpush1.msra.mxu0 0.0
      %523 = vmatprep.subr.mxu0 0.0
      %524 = vmatpush1.msra.mxu0 0.0
      %525 = vmatprep.subr.mxu0 0.0
      %526 = vmatpush1.msra.mxu0 0.0
      %527 = vmatprep.subr.mxu0 0.0
      %528 = vmatpush1.msra.mxu0 0.0
      %529 = vmatprep.subr.mxu0 0.0
      %530 = vmatpush1.msra.mxu0 0.0
      %531 = vmatprep.subr.mxu0 0.0
      %532 = vmatpush1.msra.mxu0 0.0
      %533 = vmatprep.subr.mxu0 0.0
      %534 = vmatpush1.msra.mxu0 0.0
      %535 = vmatprep.subr.mxu0 0.0
      %536 = vmatpush1.msra.mxu0 0.0
      %537 = vmatprep.subr.mxu0 0.0
      %538 = vmatpush1.msra.mxu0 0.0
      %539 = vmatprep.subr.mxu0 0.0
      %540 = vmatpush1.msra.mxu0 0.0
      %541 = vmatprep.subr.mxu0 0.0
      %542 = vmatpush1.msra.mxu0 0.0
      %543 = vmatprep.subr.mxu0 0.0
      %544 = vmatpush1.msra.mxu0 0.0
      %545 = vmatprep.subr.mxu0 0.0
      %546 = vmatpush1.msra.mxu0 0.0
      %547 = vmatprep.subr.mxu0 0.0
      %548 = vmatpush1.msra.mxu0 0.0
      %549 = vmatprep.subr.mxu0 0.0
      %550 = vmatpush1.msra.mxu0 0.0
      %551 = vmatprep.subr.mxu0 0.0
      %552 = vmatpush1.msra.mxu0 0.0
      %553 = vmatprep.subr.mxu0 0.0
      %554 = vmatpush1.msra.mxu0 0.0
      %555 = vmatprep.subr.mxu0 0.0
      %556 = vmatpush1.msra.mxu0 0.0
      %557 = vmatprep.subr.mxu0 0.0
      %558 = vmatpush1.msra.mxu0 0.0
      %559 = vmatprep.subr.mxu0 0.0
      %560 = vmatpush1.msra.mxu0 0.0
      %561 = vmatprep.subr.mxu0 0.0
      %562 = vmatpush1.msra.mxu0 0.0
      %563 = vmatprep.subr.mxu0 0.0
      %564 = vmatpush1.msra.mxu0 0.0
      %565 = vmatprep.subr.mxu0 0.0
      %566 = vmatpush1.msra.mxu0 0.0
      %567 = vmatprep.subr.mxu0 0.0
      %568 = vmatpush1.msra.mxu0 0.0
      %569 = vmatprep.subr.mxu0 0.0
      %570 = vmatpush1.msra.mxu0 0.0
      %571 = vmatprep.subr.mxu0 0.0
      %572 = vmatpush1.msra.mxu0 0.0
      %573 = vmatprep.subr.mxu0 0.0
      %574 = vmatpush1.msra.mxu0 0.0
      %575 = vmatprep.subr.mxu0 0.0
      %576 = vmatpush1.msra.mxu0 0.0
      %577 = vmatprep.subr.mxu0 0.0
      %578 = vmatpush1.msra.mxu0 0.0
      %579 = vmatprep.subr.mxu0 0.0
      %580 = vmatpush1.msra.mxu0 0.0
      %581 = vmatprep.mubr.f32.mxu0 0.0
      %582 = vmatmul.mubr.f32.gmra.mrb[0].mxu0 %v515
      %v583 = vpop.f32.mrb[0].mxu0
      %v584 = vadd.f32 0.0, %v583
      %v585 = vpop.f32.mrb[0].mxu0
      %586 = vdwg.mxu0
      %v587 = vmul.f32 %v117, 0.1
      %v588 = vmul.f32 %v584, 0.9
      %v589 = vadd.f32 %v587, %v588
      %590 = vst [vmem:[%s116] sm:$0xf] %v589
      %591 = vst [vmem:[%s116] sm:$0xf0] %v368
      %592 = vst [vmem:[%s116 + $0x8] sm:$0xf] %v369
      %p593 = scmp.lt.s32.totalorder %s12, 1
      %s594 = scalar_select %p593, %s12, 1
      %s595 = smul.addr %s594, 2
      %s596 = smul.addr %s595, 8
      %s597 = scalar_lea.vmem %s1, %s596
      // Predicated region
      $region25: #{tpu_custom_call.1} parent=23 // pred_check
        %p598 = pneg %p56
      $region26: #{tpu_custom_call.1} parent=23 // pred_check_branch
        %600 = sbr.rel (%p598) target = $region28
      $region27: #{tpu_custom_call.1} parent=23 // pred_region
        _
      $region28: #{tpu_custom_call.1} parent=23 // pred_fallthru
        _
    $region24: #{tpu_custom_call.1} parent=5 // pred_fallthru
      _
    %p601 = scmp.le.s32.totalorder 2, %s7
    // Predicated region
    $region29: #{tpu_custom_call.1} parent=5 // pred_check
      %p602 = pneg %p601
    $region30: #{tpu_custom_call.1} parent=5 // pred_check_branch
      %604 = sbr.rel (%p602) target = $region32
    $region31: #{tpu_custom_call.1} parent=5 // pred_region
      %s605 = ssub.s32 %s7, 2
      // Predicated region
      $region33: #{tpu_custom_call.1} parent=31 // pred_check
        %p606 = pneg %p62
      $region34: #{tpu_custom_call.1} parent=31 // pred_check_branch
        %608 = sbr.rel (%p606) target = $region36
      $region35: #{tpu_custom_call.1} parent=31 // pred_region
        %p609 = scmp.lt.s32.totalorder %s13, 1
        %s610 = scalar_select %p609, %s13, 1
        %s611 = smul.addr %s610, 2
        %s612 = smul.addr %s611, 8
        %s613 = scalar_lea.vmem %s1, %s612
      $region36: #{tpu_custom_call.1} parent=31 // pred_fallthru
        _
    $region32: #{tpu_custom_call.1} parent=5 // pred_fallthru
      _
  $region6: #{tpu_custom_call.1} parent=0 // loop_footer
    %s11 = sadd.s32 1, %s7
  $region7: #{tpu_custom_call.1} parent=0 // loop_footer_branch
    %6 = sbr.rel target = $region3
  $region8: #{tpu_custom_call.1} parent=0 // loop_exit
    _

</llo_original>
